<compile_context>
chip_gen: v7x
topology: tpu7x:2x2x1
jax: 0.10.0
libtpu: 0.0.40
codegen_flags: <defaults>
</compile_context>

<pallas_src>
import jax
import jax.numpy as jnp
from jax.experimental import pallas as pl
from jax.experimental.pallas import tpu as pltpu


# ----------------------------------------------------------------------------
# helpers
# ----------------------------------------------------------------------------
def _largest_tile(n, max_tile, mult=8):
    """Largest divisor of n that is <= max_tile and a multiple of `mult`
    (or equal to n itself, which is always a legal full-extent block)."""
    for t in range(min(n, max_tile), 0, -1):
        if n % t == 0 and (t % mult == 0 or t == n):
            return t
    return n


def compute_knn_idx(pos, k, offset=1):
    """k nearest neighbors (excluding self via offset), ascending distance.
    pos: (B, N, 3) -> (B, N, k) int32."""
    d2 = jnp.sum(jnp.square(pos[:, :, None, :] - pos[:, None, :, :]), axis=-1)
    _, idx = jax.lax.top_k(-d2, k + offset)          # ascending squared distance
    return idx[:, :, offset:].astype(jnp.int32)


# ----------------------------------------------------------------------------
# Kernel 1: pointwise Conv1d (kernel_size=1)  ==  per-point channel matmul
# ----------------------------------------------------------------------------
def _pointwise_kernel(x_ref, w_ref, b_ref, o_ref):
    o_ref[...] = (
        jnp.dot(x_ref[...], w_ref[...], preferred_element_type=jnp.float32)
        + b_ref[...]
    ).astype(o_ref.dtype)


def pointwise_conv1d(x, w, b, *, max_tile=1024):
    """x: (B, N, Cin), w: (Cout, Cin), b: (Cout,) -> (B, N, Cout).
    Channel-last; no transposes or pads of the activation tensor."""
    bsz, n, cin = x.shape
    cout = w.shape[0]
    m = bsz * n
    xf = x.reshape(m, cin)                      # free reshape (row-major)
    tile = _largest_tile(m, max_tile)
    wt = jnp.transpose(w)                       # (Cin, Cout)
    br = b.reshape(1, cout)

    out = pl.pallas_call(
        _pointwise_kernel,
        out_shape=jax.ShapeDtypeStruct((m, cout), jnp.float32),
        grid_spec=pltpu.PrefetchScalarGridSpec(
            num_scalar_prefetch=0,
            grid=(m // tile,),
            in_specs=[
                pl.BlockSpec((tile, cin), lambda i: (i, 0)),
                pl.BlockSpec((cin, cout), lambda i: (0, 0)),
                pl.BlockSpec((1, cout), lambda i: (0, 0)),
            ],
            out_specs=pl.BlockSpec((tile, cout), lambda i: (i, 0)),
        ),
        compiler_params=pltpu.CompilerParams(dimension_semantics=("parallel",)),
    )(xf, wt, br)
    return out.reshape(bsz, n, cout)


# ----------------------------------------------------------------------------
# Kernel 2: fused EdgeConv block
#   gather K neighbors -> edge features -> FC(relu) -> FC(relu) -> FC -> max_K
# ----------------------------------------------------------------------------
def _edgeconv_kernel(xa_ref, xt_ref, idx_ref, w1_ref, b1_ref, w2_ref, b2_ref,
                     w3_ref, b3_ref, o_ref):
    _, tn, k = idx_ref.shape          # tile of points, K neighbors
    _, n, d = xa_ref.shape            # full point count, feature dim

    x_all = xa_ref[0].astype(jnp.float32)       # (N, d)  gather source
    x_tile = xt_ref[0].astype(jnp.float32)      # (TN, d) center points
    idx = idx_ref[0]                            # (TN, K) int32

    b1 = b1_ref[...]
    b2 = b2_ref[...]
    b3 = b3_ref[...]

    acc = None
    # Unrolled loop over the (small) neighbor count; running max avoids any
    # (TN, K, F) intermediate or reshape inside the kernel.
    for j in range(k):
        # one-hot gather of neighbor j for every point in the tile (MXU matmul)
        sel = (idx[:, j:j + 1] ==
               jax.lax.broadcasted_iota(jnp.int32, (tn, n), 1)).astype(jnp.float32)
        nb = jnp.dot(sel, x_all, preferred_element_type=jnp.float32)   # (TN, d)

        edge = jnp.concatenate([x_tile, nb, nb - x_tile], axis=-1)     # (TN, 3d)

        h = jnp.dot(edge, w1_ref[...], preferred_element_type=jnp.float32) + b1
        y = jnp.concatenate([jnp.maximum(h, 0.0), x_tile], axis=-1)    # (TN, c+d)

        h = jnp.dot(y, w2_ref[...], preferred_element_type=jnp.float32) + b2
        y = jnp.concatenate([jnp.maximum(h, 0.0), y], axis=-1)         # (TN, 2c+d)

        h = jnp.dot(y, w3_ref[...], preferred_element_type=jnp.float32) + b3
        y = jnp.concatenate([h, y], axis=-1)                           # (TN, 3c+d)

        acc = y if acc is None else jnp.maximum(acc, y)                # max over K

    o_ref[0] = acc.astype(o_ref.dtype)


def edgeconv(x, knn_idx, p, *, max_tile_n=128):
    """x: (B, N, d), knn_idx: (B, N, K) int32 -> (B, N, d + 3*c)."""
    bsz, n, d = x.shape
    kk = knn_idx.shape[-1]
    c = p["w1"].shape[0]
    out_dim = d + 3 * c
    tn = _largest_tile(n, max_tile_n)

    w1t = jnp.transpose(p["w1"])
    w2t = jnp.transpose(p["w2"])
    w3t = jnp.transpose(p["w3"])
    b1r = p["b1"].reshape(1, c)
    b2r = p["b2"].reshape(1, c)
    b3r = p["b3"].reshape(1, c)

    return pl.pallas_call(
        _edgeconv_kernel,
        out_shape=jax.ShapeDtypeStruct((bsz, n, out_dim), jnp.float32),
        grid_spec=pltpu.PrefetchScalarGridSpec(
            num_scalar_prefetch=0,
            grid=(bsz, n // tn),
            in_specs=[
                pl.BlockSpec((1, n, d), lambda b, t: (b, 0, 0)),     # full x (gather src)
                pl.BlockSpec((1, tn, d), lambda b, t: (b, t, 0)),    # x tile (centers)
                pl.BlockSpec((1, tn, kk), lambda b, t: (b, t, 0)),   # knn indices tile
                pl.BlockSpec((3 * d, c), lambda b, t: (0, 0)),       # W1^T
                pl.BlockSpec((1, c), lambda b, t: (0, 0)),           # b1
                pl.BlockSpec((d + c, c), lambda b, t: (0, 0)),       # W2^T
                pl.BlockSpec((1, c), lambda b, t: (0, 0)),           # b2
                pl.BlockSpec((d + 2 * c, c), lambda b, t: (0, 0)),   # W3^T
                pl.BlockSpec((1, c), lambda b, t: (0, 0)),           # b3
            ],
            out_specs=pl.BlockSpec((1, tn, out_dim), lambda b, t: (b, t, 0)),
        ),
        compiler_params=pltpu.CompilerParams(
            dimension_semantics=("parallel", "parallel")),
    )(x, x, knn_idx, w1t, b1r, w2t, b2r, w3t, b3r)


# ----------------------------------------------------------------------------
# Module: parameter init + forward
# ----------------------------------------------------------------------------
def _linear_init(key, fan_in, fan_out):
    k1, k2 = jax.random.split(key)
    bound = 1.0 / (fan_in ** 0.5)
    w = jax.random.uniform(k1, (fan_out, fan_in), jnp.float32, -bound, bound)
    b = jax.random.uniform(k2, (fan_out,), jnp.float32, -bound, bound)
    return w, b


def init_params(key, conv_growth_rate, block_num):
    """Parameter shapes match the PyTorch module (Conv1d k=1 weights squeezed)."""
    cgr = conv_growth_rate
    dims = [cgr, cgr * 5, cgr * 10]
    blocks = []
    for i in range(block_num):
        key, kc, k1, k2, k3 = jax.random.split(key, 5)
        if i == 0:
            conv_in, conv_out = 3, cgr
        else:
            conv_in, conv_out = dims[i], cgr * 2
        cw, cb = _linear_init(kc, conv_in, conv_out)
        ec_in, c = conv_out, cgr
        w1, b1 = _linear_init(k1, 3 * ec_in, c)        # EdgeConv.layer_first
        w2, b2 = _linear_init(k2, ec_in + c, c)        # EdgeConv.layers[0]
        w3, b3 = _linear_init(k3, ec_in + 2 * c, c)    # EdgeConv.layer_last
        blocks.append(dict(conv_w=cw, conv_b=cb,
                           w1=w1, b1=b1, w2=w2, b2=b2, w3=w3, b3=b3))
    return dict(blocks=blocks)


def gcn_feature_extractor(points, params, knn_k):
    """points: (B, N, 3) -> (B, N, 5*conv_growth_rate*block_num)."""
    # All EdgeConvs query knn on `points`; compute once and reuse (same result).
    knn_idx = compute_knn_idx(points, knn_k, offset=1)
    feat = points
    for i, blk in enumerate(params["blocks"]):
        cur = pointwise_conv1d(feat, blk["conv_w"], blk["conv_b"])
        if i == 0:
            feat = cur
        ec = edgeconv(cur, knn_idx, blk)
        feat = jnp.concatenate([feat, ec], axis=-1)
    return feat


# ----------------------------------------------------------------------------
# Plain-JAX reference (mirrors the PyTorch math) for a sanity check
# ----------------------------------------------------------------------------
def _edgeconv_ref(x, knn_idx, p):
    knn_feat = jax.vmap(lambda xb, ib: xb[ib])(x, knn_idx)           # (B,N,K,d)
    x_tiled = jnp.broadcast_to(x[:, :, None, :], knn_feat.shape)
    edge = jnp.concatenate([x_tiled, knn_feat, knn_feat - x_tiled], axis=-1)

    def fc(z, w, b):
        return z @ w.T + b

    y = jnp.concatenate([jax.nn.relu(fc(edge, p["w1"], p["b1"])), x_tiled], axis=-1)
    y = jnp.concatenate([jax.nn.relu(fc(y, p["w2"], p["b2"])), y], axis=-1)
    y = jnp.concatenate([fc(y, p["w3"], p["b3"]), y], axis=-1)
    return jnp.max(y, axis=2)


def gcn_reference(points, params, knn_k):
    knn_idx = compute_knn_idx(points, knn_k, offset=1)
    feat = points
    for i, blk in enumerate(params["blocks"]):
        cur = feat @ blk["conv_w"].T + blk["conv_b"]
        if i == 0:
            feat = cur
        ec = _edgeconv_ref(cur, knn_idx, blk)
        feat = jnp.concatenate([feat, ec], axis=-1)
    return feat


if __name__ == "__main__":
    key = jax.random.PRNGKey(0)
    k_x, k_p = jax.random.split(key)

    B, N = 2, 64
    conv_growth_rate, knn_k, block_num = 4, 8, 2

    points = jax.random.normal(k_x, (B, N, 3), jnp.float32)
    params = init_params(k_p, conv_growth_rate, block_num)

    out = gcn_feature_extractor(points, params, knn_k)
    out = jax.block_until_ready(out)

    ref = gcn_reference(points, params, knn_k)
    expected_dim = 5 * conv_growth_rate * block_num
    assert out.shape == (B, N, expected_dim), out.shape
    assert jnp.allclose(out, ref, atol=1e-4, rtol=1e-4)

    print("KERNEL_OK")
</pallas_src>

<mosaic_0001>
module attributes {stable_mosaic.version = 11 : i64} {
  func.func @_pointwise_kernel(%arg0: i32, %arg1: memref<128x3xf32, #tpu.memory_space<vmem>>, %arg2: memref<3x4xf32, #tpu.memory_space<vmem>>, %arg3: memref<1x4xf32, #tpu.memory_space<vmem>>, %arg4: memref<128x4xf32, #tpu.memory_space<vmem>>) attributes {dimension_semantics = [#tpu.dimension_semantics<parallel>], iteration_bounds = array<i64: 1>, scalar_prefetch = 0 : i64, scratch_operands = 0 : i64, tpu.core_type = #tpu.core_type<tc>, window_params = [{transform_indices = @transform_0, window_bounds = array<i64: 128, 3>}, {pipeline_mode = #tpu.pipeline_mode<synchronous>, transform_indices = @transform_1, window_bounds = array<i64: 3, 4>}, {pipeline_mode = #tpu.pipeline_mode<synchronous>, transform_indices = @transform_2, window_bounds = array<i64: 1, 4>}, {transform_indices = @transform_3, window_bounds = array<i64: 128, 4>}]} {
    %c0 = arith.constant 0 : index
    %c0_0 = arith.constant 0 : index
    %0 = vector.load %arg1[%c0, %c0_0] : memref<128x3xf32, #tpu.memory_space<vmem>>, vector<128x3xf32>
    %c0_1 = arith.constant 0 : index
    %c0_2 = arith.constant 0 : index
    %1 = vector.load %arg2[%c0_1, %c0_2] : memref<3x4xf32, #tpu.memory_space<vmem>>, vector<3x4xf32>
    %cst = arith.constant dense<0.000000e+00> : vector<128x4xf32>
    %2 = tpu.matmul %0, %1, %cst {dimension_numbers = #tpu.dot_dimension_numbers<[1], [0], [0], [1], [0, 0, 1, 1], [], []>} : vector<128x3xf32>, vector<3x4xf32>, vector<128x4xf32> -> vector<128x4xf32>
    %c0_3 = arith.constant 0 : index
    %c0_4 = arith.constant 0 : index
    %3 = vector.load %arg3[%c0_3, %c0_4] : memref<1x4xf32, #tpu.memory_space<vmem>>, vector<1x4xf32>
    %4 = vector.broadcast %3 : vector<1x4xf32> to vector<128x4xf32>
    %5 = arith.addf %2, %4 : vector<128x4xf32>
    %c0_5 = arith.constant 0 : index
    %c0_6 = arith.constant 0 : index
    %6 = vector.load %arg4[%c0_5, %c0_6] : memref<128x4xf32, #tpu.memory_space<vmem>>, vector<128x4xf32>
    tpu.vector_store %arg4[%c0_5, %c0_6], %5 {strides = array<i32>} : memref<128x4xf32, #tpu.memory_space<vmem>>, vector<128x4xf32>,
    return
  }
  func.func @transform_0(%arg0: i32) -> (i32, i32) {
    %c0_i32 = arith.constant 0 : i32
    %c0_i32_0 = arith.constant 0 : i32
    return %arg0, %c0_i32 : i32, i32
  }
  func.func @transform_1(%arg0: i32) -> (i32, i32) {
    %c0_i32 = arith.constant 0 : i32
    %c0_i32_0 = arith.constant 0 : i32
    %c0_i32_1 = arith.constant 0 : i32
    return %c0_i32, %c0_i32_0 : i32, i32
  }
  func.func @transform_2(%arg0: i32) -> (i32, i32) {
    %c0_i32 = arith.constant 0 : i32
    %c0_i32_0 = arith.constant 0 : i32
    %c0_i32_1 = arith.constant 0 : i32
    return %c0_i32, %c0_i32_0 : i32, i32
  }
  func.func @transform_3(%arg0: i32) -> (i32, i32) {
    %c0_i32 = arith.constant 0 : i32
    %c0_i32_0 = arith.constant 0 : i32
    return %arg0, %c0_i32 : i32, i32
  }
}

</mosaic_0001>

<llo_original>
// kernel: tpu_custom_call.1
$region0: #{tpu_custom_call.1}
  #allocation0 [shape = 'u32[]', space=smem, size = 0x4, offset = 0x4, fixed_abs, tag = 'smem constant byte address 0x4 - core index']
  #allocation1 [shape = 'u32[144,128]{1,0:T(1,128)}', space=vmem, size = 0x12000, scoped, tag = 'internal scratch']
  %s0 = inlined_call_operand.vmem [shape: f32[128,3], index: 0, kind: input, shape index: {}]
  %s1 = inlined_call_operand.vmem [shape: f32[3,4], index: 1, kind: input, shape index: {}]
  %s2 = inlined_call_operand.vmem [shape: f32[1,4], index: 2, kind: input, shape index: {}]
  %s3 = inlined_call_operand.vmem [shape: f32[128,4], index: 3, kind: output, shape index: {}]
  %s4 = sld [smem:[#allocation0]]
  $region22: #{tpu_custom_call.1} parent=0
    _
  %s6 = ssub.s32 1, %s4
  %s7 = scalar_select 0, %s6, %s4
  // Predicated region
  $region2: #{tpu_custom_call.1} parent=0 // pred_check
    _
  $region3: #{tpu_custom_call.1} parent=0 // pred_check_branch
    %9 = sbr.rel (0) target = $region5
  $region4: #{tpu_custom_call.1} parent=0 // pred_region
    _
  $region5: #{tpu_custom_call.1} parent=0 // pred_fallthru
    _
  // Predicated region
  $region6: #{tpu_custom_call.1} parent=0 // pred_check
    _
  $region7: #{tpu_custom_call.1} parent=0 // pred_check_branch
    %11 = sbr.rel (0) target = $region9
  $region8: #{tpu_custom_call.1} parent=0 // pred_region
    _
  $region9: #{tpu_custom_call.1} parent=0 // pred_fallthru
    _
  // Predicated region
  $region10: #{tpu_custom_call.1} parent=0 // pred_check
    _
  $region11: #{tpu_custom_call.1} parent=0 // pred_check_branch
    %13 = sbr.rel (0) target = $region13
  $region12: #{tpu_custom_call.1} parent=0 // pred_region
    _
  $region13: #{tpu_custom_call.1} parent=0 // pred_fallthru
    _
  %v14 = vld [vmem:[%s0] sm:$0xff]
  %v15 = vld [vmem:[%s0 + $0x8] sm:$0xff]
  %v16 = vld [vmem:[%s0 + $0x10] sm:$0xff]
  %v17 = vld [vmem:[%s0 + $0x18] sm:$0xff]
  %v18 = vld [vmem:[%s0 + $0x20] sm:$0xff]
  %v19 = vld [vmem:[%s0 + $0x28] sm:$0xff]
  %v20 = vld [vmem:[%s0 + $0x30] sm:$0xff]
  %v21 = vld [vmem:[%s0 + $0x38] sm:$0xff]
  %v22 = vld [vmem:[%s0 + $0x40] sm:$0xff]
  %v23 = vld [vmem:[%s0 + $0x48] sm:$0xff]
  %v24 = vld [vmem:[%s0 + $0x50] sm:$0xff]
  %v25 = vld [vmem:[%s0 + $0x58] sm:$0xff]
  %v26 = vld [vmem:[%s0 + $0x60] sm:$0xff]
  %v27 = vld [vmem:[%s0 + $0x68] sm:$0xff]
  %v28 = vld [vmem:[%s0 + $0x70] sm:$0xff]
  %v29 = vld [vmem:[%s0 + $0x78] sm:$0xff]
  %v30 = vld [vmem:[%s1] sm:$0x7]
  %v31 = vld [vmem:[%s2] sm:$0x1]
  %v33 = vlaneseq
  %v34 = vshrl.u32 %v33, 7
  %v35 = vsub.s32 0, %v34
  %v36 = vrot.slane %v31, %v35
  %vm38 = vcmask 23552
  %v40 = vsel %vm38, %v14, 0
  %v43 = vsel %vm38, %v15, 0
  %v46 = vsel %vm38, %v16, 0
  %v49 = vsel %vm38, %v17, 0
  %v52 = vsel %vm38, %v18, 0
  %v55 = vsel %vm38, %v19, 0
  %v58 = vsel %vm38, %v20, 0
  %v61 = vsel %vm38, %v21, 0
  %v64 = vsel %vm38, %v22, 0
  %v67 = vsel %vm38, %v23, 0
  %v70 = vsel %vm38, %v24, 0
  %v73 = vsel %vm38, %v25, 0
  %v76 = vsel %vm38, %v26, 0
  %v79 = vsel %vm38, %v27, 0
  %v82 = vsel %vm38, %v28, 0
  %v85 = vsel %vm38, %v29, 0
  %vm87 = vcmask 1042432
  %v89 = vsel %vm87, %v30, 0
  %91 = vmatprep.subr.mxu0 0.0
  %92 = vmatpush1.msra.mxu0 %v89
  %93 = vmatprep.subr.mxu0 0.0
  %94 = vmatpush1.msra.mxu0 0.0
  %95 = vmatprep.subr.mxu0 0.0
  %96 = vmatpush1.msra.mxu0 0.0
  %97 = vmatprep.subr.mxu0 0.0
  %98 = vmatpush1.msra.mxu0 0.0
  %99 = vmatprep.subr.mxu0 0.0
  %100 = vmatpush1.msra.mxu0 0.0
  %101 = vmatprep.subr.mxu0 0.0
  %102 = vmatpush1.msra.mxu0 0.0
  %103 = vmatprep.subr.mxu0 0.0
  %104 = vmatpush1.msra.mxu0 0.0
  %105 = vmatprep.subr.mxu0 0.0
  %106 = vmatpush1.msra.mxu0 0.0
  %107 = vmatprep.subr.mxu0 0.0
  %108 = vmatpush1.msra.mxu0 0.0
  %109 = vmatprep.subr.mxu0 0.0
  %110 = vmatpush1.msra.mxu0 0.0
  %111 = vmatprep.subr.mxu0 0.0
  %112 = vmatpush1.msra.mxu0 0.0
  %113 = vmatprep.subr.mxu0 0.0
  %114 = vmatpush1.msra.mxu0 0.0
  %115 = vmatprep.subr.mxu0 0.0
  %116 = vmatpush1.msra.mxu0 0.0
  %117 = vmatprep.subr.mxu0 0.0
  %118 = vmatpush1.msra.mxu0 0.0
  %119 = vmatprep.subr.mxu0 0.0
  %120 = vmatpush1.msra.mxu0 0.0
  %121 = vmatprep.subr.mxu0 0.0
  %122 = vmatpush1.msra.mxu0 0.0
  %123 = vmatprep.subr.mxu0 0.0
  %124 = vmatpush1.msra.mxu0 0.0
  %125 = vmatprep.subr.mxu0 0.0
  %126 = vmatpush1.msra.mxu0 0.0
  %127 = vmatprep.subr.mxu0 0.0
  %128 = vmatpush1.msra.mxu0 0.0
  %129 = vmatprep.subr.mxu0 0.0
  %130 = vmatpush1.msra.mxu0 0.0
  %131 = vmatprep.subr.mxu0 0.0
  %132 = vmatpush1.msra.mxu0 0.0
  %133 = vmatprep.subr.mxu0 0.0
  %134 = vmatpush1.msra.mxu0 0.0
  %135 = vmatprep.subr.mxu0 0.0
  %136 = vmatpush1.msra.mxu0 0.0
  %137 = vmatprep.subr.mxu0 0.0
  %138 = vmatpush1.msra.mxu0 0.0
  %139 = vmatprep.subr.mxu0 0.0
  %140 = vmatpush1.msra.mxu0 0.0
  %141 = vmatprep.subr.mxu0 0.0
  %142 = vmatpush1.msra.mxu0 0.0
  %143 = vmatprep.subr.mxu0 0.0
  %144 = vmatpush1.msra.mxu0 0.0
  %145 = vmatprep.subr.mxu0 0.0
  %146 = vmatpush1.msra.mxu0 0.0
  %147 = vmatprep.subr.mxu0 0.0
  %148 = vmatpush1.msra.mxu0 0.0
  %149 = vmatprep.subr.mxu0 0.0
  %150 = vmatpush1.msra.mxu0 0.0
  %151 = vmatprep.subr.mxu0 0.0
  %152 = vmatpush1.msra.mxu0 0.0
  %153 = vmatprep.subr.mxu0 0.0
  %154 = vmatpush1.msra.mxu0 0.0
  %155 = vmatprep.mubr.f32.mxu0 0.0
  %156 = vmatmul.mubr.f32.gmra.mrb[0].mxu0 %v40
  %v157 = vpop.f32.mrb[0].mxu0
  %v158 = vadd.f32 %v36, %v157
  %v159 = vpop.f32.mrb[0].mxu0
  %160 = vmatprep.mubr.f32.mxu0 0.0
  %161 = vmatmul.mubr.f32.gmra.mrb[0].mxu0 %v43
  %v162 = vpop.f32.mrb[0].mxu0
  %v163 = vadd.f32 %v36, %v162
  %v164 = vpop.f32.mrb[0].mxu0
  %165 = vmatprep.mubr.f32.mxu0 0.0
  %166 = vmatmul.mubr.f32.gmra.mrb[0].mxu0 %v46
  %v167 = vpop.f32.mrb[0].mxu0
  %v168 = vadd.f32 %v36, %v167
  %v169 = vpop.f32.mrb[0].mxu0
  %170 = vmatprep.mubr.f32.mxu0 0.0
  %171 = vmatmul.mubr.f32.gmra.mrb[0].mxu0 %v49
  %v172 = vpop.f32.mrb[0].mxu0
  %v173 = vadd.f32 %v36, %v172
  %v174 = vpop.f32.mrb[0].mxu0
  %175 = vmatprep.mubr.f32.mxu0 0.0
  %176 = vmatmul.mubr.f32.gmra.mrb[0].mxu0 %v52
  %v177 = vpop.f32.mrb[0].mxu0
  %v178 = vadd.f32 %v36, %v177
  %v179 = vpop.f32.mrb[0].mxu0
  %180 = vmatprep.mubr.f32.mxu0 0.0
  %181 = vmatmul.mubr.f32.gmra.mrb[0].mxu0 %v55
  %v182 = vpop.f32.mrb[0].mxu0
  %v183 = vadd.f32 %v36, %v182
  %v184 = vpop.f32.mrb[0].mxu0
  %185 = vmatprep.mubr.f32.mxu0 0.0
  %186 = vmatmul.mubr.f32.gmra.mrb[0].mxu0 %v58
  %v187 = vpop.f32.mrb[0].mxu0
  %v188 = vadd.f32 %v36, %v187
  %v189 = vpop.f32.mrb[0].mxu0
  %190 = vmatprep.mubr.f32.mxu0 0.0
  %191 = vmatmul.mubr.f32.gmra.mrb[0].mxu0 %v61
  %v192 = vpop.f32.mrb[0].mxu0
  %v193 = vadd.f32 %v36, %v192
  %v194 = vpop.f32.mrb[0].mxu0
  %195 = vmatprep.mubr.f32.mxu0 0.0
  %196 = vmatmul.mubr.f32.gmra.mrb[0].mxu0 %v64
  %v197 = vpop.f32.mrb[0].mxu0
  %v198 = vadd.f32 %v36, %v197
  %v199 = vpop.f32.mrb[0].mxu0
  %200 = vmatprep.mubr.f32.mxu0 0.0
  %201 = vmatmul.mubr.f32.gmra.mrb[0].mxu0 %v67
  %v202 = vpop.f32.mrb[0].mxu0
  %v203 = vadd.f32 %v36, %v202
  %v204 = vpop.f32.mrb[0].mxu0
  %205 = vmatprep.mubr.f32.mxu0 0.0
  %206 = vmatmul.mubr.f32.gmra.mrb[0].mxu0 %v70
  %v207 = vpop.f32.mrb[0].mxu0
  %v208 = vadd.f32 %v36, %v207
  %v209 = vpop.f32.mrb[0].mxu0
  %210 = vmatprep.mubr.f32.mxu0 0.0
  %211 = vmatmul.mubr.f32.gmra.mrb[0].mxu0 %v73
  %v212 = vpop.f32.mrb[0].mxu0
  %v213 = vadd.f32 %v36, %v212
  %v214 = vpop.f32.mrb[0].mxu0
  %215 = vmatprep.mubr.f32.mxu0 0.0
  %216 = vmatmul.mubr.f32.gmra.mrb[0].mxu0 %v76
  %v217 = vpop.f32.mrb[0].mxu0
  %v218 = vadd.f32 %v36, %v217
  %v219 = vpop.f32.mrb[0].mxu0
  %220 = vmatprep.mubr.f32.mxu0 0.0
  %221 = vmatmul.mubr.f32.gmra.mrb[0].mxu0 %v79
  %v222 = vpop.f32.mrb[0].mxu0
  %v223 = vadd.f32 %v36, %v222
  %v224 = vpop.f32.mrb[0].mxu0
  %225 = vmatprep.mubr.f32.mxu0 0.0
  %226 = vmatmul.mubr.f32.gmra.mrb[0].mxu0 %v82
  %v227 = vpop.f32.mrb[0].mxu0
  %v228 = vadd.f32 %v36, %v227
  %v229 = vpop.f32.mrb[0].mxu0
  %230 = vmatprep.mubr.f32.mxu0 0.0
  %231 = vmatmul.mubr.f32.gmra.mrb[0].mxu0 %v85
  %v232 = vpop.f32.mrb[0].mxu0
  %v233 = vadd.f32 %v36, %v232
  %v234 = vpop.f32.mrb[0].mxu0
  %235 = vdwg.mxu0
  %vm236 = vcmask 31744
  %237 = vst.msk [vmem:[%s3] sm:$0xff] %vm236, %v158
  %238 = vst.msk [vmem:[%s3 + $0x8] sm:$0xff] %vm236, %v163
  %239 = vst.msk [vmem:[%s3 + $0x10] sm:$0xff] %vm236, %v168
  %240 = vst.msk [vmem:[%s3 + $0x18] sm:$0xff] %vm236, %v173
  %241 = vst.msk [vmem:[%s3 + $0x20] sm:$0xff] %vm236, %v178
  %242 = vst.msk [vmem:[%s3 + $0x28] sm:$0xff] %vm236, %v183
  %243 = vst.msk [vmem:[%s3 + $0x30] sm:$0xff] %vm236, %v188
  %244 = vst.msk [vmem:[%s3 + $0x38] sm:$0xff] %vm236, %v193
  %245 = vst.msk [vmem:[%s3 + $0x40] sm:$0xff] %vm236, %v198
  %246 = vst.msk [vmem:[%s3 + $0x48] sm:$0xff] %vm236, %v203
  %247 = vst.msk [vmem:[%s3 + $0x50] sm:$0xff] %vm236, %v208
  %248 = vst.msk [vmem:[%s3 + $0x58] sm:$0xff] %vm236, %v213
  %249 = vst.msk [vmem:[%s3 + $0x60] sm:$0xff] %vm236, %v218
  %250 = vst.msk [vmem:[%s3 + $0x68] sm:$0xff] %vm236, %v223
  %251 = vst.msk [vmem:[%s3 + $0x70] sm:$0xff] %vm236, %v228
  %252 = vst.msk [vmem:[%s3 + $0x78] sm:$0xff] %vm236, %v233
  // Predicated region
  $region14: #{tpu_custom_call.1} parent=0 // pred_check
    _
  $region15: #{tpu_custom_call.1} parent=0 // pred_check_branch
    %254 = sbr.rel (0) target = $region17
  $region16: #{tpu_custom_call.1} parent=0 // pred_region
    _
  $region17: #{tpu_custom_call.1} parent=0 // pred_fallthru
    _
  // Predicated region
  $region18: #{tpu_custom_call.1} parent=0 // pred_check
    _
  $region19: #{tpu_custom_call.1} parent=0 // pred_check_branch
    %256 = sbr.rel (0) target = $region21
  $region20: #{tpu_custom_call.1} parent=0 // pred_region
    _
  $region21: #{tpu_custom_call.1} parent=0 // pred_fallthru
    _

</llo_original>
